<compile_context>
chip_gen: v5e
topology: v5e:2x2
jax: 0.10.0
libtpu: 0.0.40
codegen_flags: <defaults>
</compile_context>

<pallas_src>
import jax
import jax.numpy as jnp
import numpy as np
from jax import lax
from jax.experimental import pallas as pl
from jax.experimental.pallas import tpu as pltpu


# ---------------------------------------------------------------------------
# Pallas kernel: full BasicBlock for one batch element, lane-dense rows.
# ---------------------------------------------------------------------------
def basic_block_kernel(x_ref,      # (H,   W*C)      f32  input rows (also residual)
                       w1_ref,     # (3*W*C, W*C)    bf16 banded conv1 weights
                       w2_ref,     # (3*W*C, W*C)    bf16 banded conv2 weights
                       sb_ref,     # (4,   W*C)      f32  [s1, b1, s2, b2] tiled over W
                       out_ref,    # (H,   W*C)      f32  output rows
                       pad_ref):   # scratch (H+2, W*C) f32: zero top/bottom border rows
    H, WC = x_ref.shape

    # Zero only the two border rows (cheap, done every step so correctness
    # does not depend on scratch state carried across grid iterations).
    zrow = jnp.zeros((1, WC), jnp.float32)
    pad_ref[0:1, :] = zrow
    pad_ref[H + 1:H + 2, :] = zrow

    sb = sb_ref[...]                      # (4, W*C) f32

    def conv3x3(rows_f32, w_ref_):
        # rows_f32: (H, W*C) f32.  Write into the zero-bordered scratch to get
        # H padding, gather the 3 row-shifted views, lane-concat (all offsets
        # are multiples of 128) into one im2col slab and run a single MXU GEMM
        # against the banded weight (3x3 taps + W padding baked into the band).
        pad_ref[1:H + 1, :] = rows_f32
        patches = jnp.concatenate(
            [pad_ref[0:H, :], pad_ref[1:H + 1, :], pad_ref[2:H + 2, :]],
            axis=1)                                            # (H, 3*W*C) f32
        return jnp.dot(patches.astype(jnp.bfloat16), w_ref_[...],
                       preferred_element_type=jnp.float32)     # (H, W*C) f32

    x = x_ref[...]                        # f32; identity branch read once

    # conv1 -> bn1 (folded) -> relu
    out1 = conv3x3(x, w1_ref)
    out1 = jnp.maximum(out1 * sb[0:1, :] + sb[1:2, :], 0.0)

    # conv2 -> bn2 (folded)
    out2 = conv3x3(out1, w2_ref)
    out2 = out2 * sb[2:3, :] + sb[3:4, :]

    # residual add (identity == input, Cin == Cout) + final relu
    out_ref[...] = jnp.maximum(out2 + x, 0.0).astype(out_ref.dtype)


# ---------------------------------------------------------------------------
# Wrapper helpers
# ---------------------------------------------------------------------------
def _band_conv3x3(w, width):
    """Fold a (Cout, Cin, 3, 3) conv weight into a banded (3*W*Cin, W*Cout)
    matrix so that a row-im2col slab (lane index ky*W*Cin + wi*Cin + ci)
    matmul'd against it yields the conv output (lane index wo*Cout + co).
    W-direction zero padding is encoded by simply omitting out-of-range taps."""
    cout, cin = int(w.shape[0]), int(w.shape[1])
    # P[kx, wi, wo] = 1  iff  wi == wo + kx - 1 and 0 <= wi < width
    p = np.zeros((3, width, width), np.float32)
    for kx in range(3):
        for wo in range(width):
            wi = wo + kx - 1
            if 0 <= wi < width:
                p[kx, wi, wo] = 1.0
    p = jnp.asarray(p)
    # big[ky, wi, ci, wo, co] = sum_kx P[kx, wi, wo] * w[co, ci, ky, kx]
    big = jnp.einsum('xiw,ocyx->yicwo', p, w.astype(jnp.float32))
    return big.reshape(3 * width * cin, width * cout)


@jax.jit
def basic_block_forward(x_nchw, w1, g1, be1, rm1, rv1, w2, g2, be2, rm2, rv2,
                        eps=1e-5):
    N, Cin, H, W = x_nchw.shape
    Cout = w1.shape[0]
    if Cin != Cout:
        # TODO(synk): downsample / channel-changing path not implemented.
        raise NotImplementedError("identity residual requires Cin == Cout")

    WC = W * Cin  # == W * Cout

    # NCHW -> lane-dense rows (N, H, W*C); this is the only data-layout pass.
    x_rows = jnp.transpose(x_nchw, (0, 2, 3, 1)).reshape(N, H, WC)
    x_rows = x_rows.astype(jnp.float32)

    # Banded conv weights, cast once to bf16 for the MXU.
    w1b = _band_conv3x3(w1, W).astype(jnp.bfloat16)
    w2b = _band_conv3x3(w2, W).astype(jnp.bfloat16)

    # Fold BN (inference / running stats) into per-channel scale+bias, tiled
    # across W to match the lane-dense layout; merged into one (4, W*C) array.
    def fold_bn(gamma, beta, mean, var):
        scale = gamma.astype(jnp.float32) / jnp.sqrt(var.astype(jnp.float32) + eps)
        bias = beta.astype(jnp.float32) - mean.astype(jnp.float32) * scale
        return jnp.tile(scale, W), jnp.tile(bias, W)

    s1, b1 = fold_bn(g1, be1, rm1, rv1)
    s2, b2 = fold_bn(g2, be2, rm2, rv2)
    sb = jnp.stack([s1, b1, s2, b2]).astype(jnp.float32)       # (4, W*C)

    grid_spec = pltpu.PrefetchScalarGridSpec(
        num_scalar_prefetch=0,
        grid=(N,),
        in_specs=[
            pl.BlockSpec((None, H, WC), lambda n: (n, 0, 0)),   # x rows
            pl.BlockSpec((3 * WC, WC), lambda n: (0, 0)),       # banded w1
            pl.BlockSpec((3 * WC, WC), lambda n: (0, 0)),       # banded w2
            pl.BlockSpec((4, WC), lambda n: (0, 0)),            # scale/bias
        ],
        out_specs=pl.BlockSpec((None, H, WC), lambda n: (n, 0, 0)),
        scratch_shapes=[pltpu.VMEM((H + 2, WC), jnp.float32)],
    )

    out_rows = pl.pallas_call(
        basic_block_kernel,
        out_shape=jax.ShapeDtypeStruct((N, H, WC), jnp.float32),
        grid_spec=grid_spec,
        compiler_params=pltpu.CompilerParams(
            dimension_semantics=("parallel",)),
    )(x_rows, w1b, w2b, sb)

    # lane-dense rows -> NCHW
    out = out_rows.reshape(N, H, W, Cout)
    return jnp.transpose(out, (0, 3, 1, 2))


# ---------------------------------------------------------------------------
# Reference with the same precision contract (bf16 conv inputs, f32 accumulate,
# f32 BN / residual) for a tight correctness check.
# ---------------------------------------------------------------------------
def reference_forward(x, w1, g1, be1, rm1, rv1, w2, g2, be2, rm2, rv2, eps=1e-5):
    cd = jnp.bfloat16

    def conv(x_, w_):
        return lax.conv_general_dilated(
            x_.astype(cd), w_.astype(cd), window_strides=(1, 1),
            padding=((1, 1), (1, 1)),
            dimension_numbers=("NCHW", "OIHW", "NCHW"),
            preferred_element_type=jnp.float32)

    def bn(x_, g, b, m, v):
        g = g.reshape(1, -1, 1, 1); b = b.reshape(1, -1, 1, 1)
        m = m.reshape(1, -1, 1, 1); v = v.reshape(1, -1, 1, 1)
        return (x_ - m) / jnp.sqrt(v + eps) * g + b

    out = jnp.maximum(bn(conv(x, w1), g1, be1, rm1, rv1), 0.0)
    out = bn(conv(out, w2), g2, be2, rm2, rv2)
    out = out + x
    return jnp.maximum(out, 0.0)


if __name__ == "__main__":
    # Small shapes consistent with the module (inplanes == planes, stride=1).
    # C=8, W=16 makes the lane-dense row width exactly 128.
    N, C, H, W = 2, 8, 16, 16

    key = jax.random.PRNGKey(0)
    keys = jax.random.split(key, 11)

    x = jax.random.normal(keys[0], (N, C, H, W), jnp.float32)

    # conv weights: (Cout, Cin, 3, 3), no bias (bias=False in the module)
    w1 = jax.random.normal(keys[1], (C, C, 3, 3), jnp.float32) * 0.1
    w2 = jax.random.normal(keys[2], (C, C, 3, 3), jnp.float32) * 0.1

    # BatchNorm parameters (inference / running-stats semantics)
    g1 = 1.0 + 0.1 * jax.random.normal(keys[3], (C,), jnp.float32)
    be1 = 0.1 * jax.random.normal(keys[4], (C,), jnp.float32)
    rm1 = 0.1 * jax.random.normal(keys[5], (C,), jnp.float32)
    rv1 = 1.0 + 0.1 * jnp.abs(jax.random.normal(keys[6], (C,), jnp.float32))

    g2 = 1.0 + 0.1 * jax.random.normal(keys[7], (C,), jnp.float32)
    be2 = 0.1 * jax.random.normal(keys[8], (C,), jnp.float32)
    rm2 = 0.1 * jax.random.normal(keys[9], (C,), jnp.float32)
    rv2 = 1.0 + 0.1 * jnp.abs(jax.random.normal(keys[10], (C,), jnp.float32))

    out = basic_block_forward(x, w1, g1, be1, rm1, rv1, w2, g2, be2, rm2, rv2)
    out = jax.block_until_ready(out)

    ref = reference_forward(x, w1, g1, be1, rm1, rv1, w2, g2, be2, rm2, rv2)
    ref = jax.block_until_ready(ref)

    # Tolerance covers bf16-input / f32-accumulate compute on both sides.
    np.testing.assert_allclose(np.asarray(out), np.asarray(ref),
                               rtol=1e-2, atol=1e-2)
    print("KERNEL_OK")
</pallas_src>

<mosaic_0001>
module attributes {stable_mosaic.version = 11 : i64} {
  func.func @basic_block_kernel(%arg0: i32, %arg1: memref<1x16x128xf32, #tpu.memory_space<vmem>>, %arg2: memref<384x128xbf16, #tpu.memory_space<vmem>>, %arg3: memref<384x128xbf16, #tpu.memory_space<vmem>>, %arg4: memref<4x128xf32, #tpu.memory_space<vmem>>, %arg5: memref<1x16x128xf32, #tpu.memory_space<vmem>>, %arg6: memref<18x128xf32, #tpu.memory_space<vmem>>) attributes {dimension_semantics = [#tpu.dimension_semantics<parallel>], iteration_bounds = array<i64: 2>, scalar_prefetch = 0 : i64, scratch_operands = 1 : i64, tpu.core_type = #tpu.core_type<tc>, window_params = [{transform_indices = @transform_0, window_bounds = array<i64: 1, 16, 128>}, {pipeline_mode = #tpu.pipeline_mode<synchronous>, transform_indices = @transform_1, window_bounds = array<i64: 384, 128>}, {pipeline_mode = #tpu.pipeline_mode<synchronous>, transform_indices = @transform_2, window_bounds = array<i64: 384, 128>}, {pipeline_mode = #tpu.pipeline_mode<synchronous>, transform_indices = @transform_3, window_bounds = array<i64: 4, 128>}, {transform_indices = @transform_4, window_bounds = array<i64: 1, 16, 128>}]} {
    %cst = arith.constant 0.000000e+00 : f32
    %0 = vector.broadcast %cst : f32 to vector<1x128xf32>
    %c0 = arith.constant 0 : index
    %c0_0 = arith.constant 0 : index
    %1 = vector.load %arg6[%c0, %c0_0] : memref<18x128xf32, #tpu.memory_space<vmem>>, vector<1x128xf32>
    tpu.vector_store %arg6[%c0, %c0_0], %0 {strides = array<i32>} : memref<18x128xf32, #tpu.memory_space<vmem>>, vector<1x128xf32>,
    %c17 = arith.constant 17 : index
    %c0_1 = arith.constant 0 : index
    %2 = vector.load %arg6[%c17, %c0_1] : memref<18x128xf32, #tpu.memory_space<vmem>>, vector<1x128xf32>
    tpu.vector_store %arg6[%c17, %c0_1], %0 {strides = array<i32>} : memref<18x128xf32, #tpu.memory_space<vmem>>, vector<1x128xf32>,
    %c0_2 = arith.constant 0 : index
    %c0_3 = arith.constant 0 : index
    %3 = vector.load %arg4[%c0_2, %c0_3] : memref<4x128xf32, #tpu.memory_space<vmem>>, vector<4x128xf32>
    %c0_4 = arith.constant 0 : index
    %c0_5 = arith.constant 0 : index
    %c0_6 = arith.constant 0 : index
    %4 = vector.load %arg1[%c0_4, %c0_5, %c0_6] : memref<1x16x128xf32, #tpu.memory_space<vmem>>, vector<1x16x128xf32>
    %5 = vector.shape_cast %4 : vector<1x16x128xf32> to vector<16x128xf32>
    %c1 = arith.constant 1 : index
    %c0_7 = arith.constant 0 : index
    %6 = vector.load %arg6[%c1, %c0_7] : memref<18x128xf32, #tpu.memory_space<vmem>>, vector<16x128xf32>
    tpu.vector_store %arg6[%c1, %c0_7], %5 {strides = array<i32>} : memref<18x128xf32, #tpu.memory_space<vmem>>, vector<16x128xf32>,
    %c0_8 = arith.constant 0 : index
    %c0_9 = arith.constant 0 : index
    %7 = vector.load %arg6[%c0_8, %c0_9] : memref<18x128xf32, #tpu.memory_space<vmem>>, vector<16x128xf32>
    %c1_10 = arith.constant 1 : index
    %c0_11 = arith.constant 0 : index
    %8 = vector.load %arg6[%c1_10, %c0_11] : memref<18x128xf32, #tpu.memory_space<vmem>>, vector<16x128xf32>
    %c2 = arith.constant 2 : index
    %c0_12 = arith.constant 0 : index
    %9 = vector.load %arg6[%c2, %c0_12] : memref<18x128xf32, #tpu.memory_space<vmem>>, vector<16x128xf32>
    %10 = tpu.concatenate %7, %8, %9 in 1 : vector<16x128xf32>, vector<16x128xf32>, vector<16x128xf32> -> vector<16x384xf32>
    %11 = arith.truncf %10 : vector<16x384xf32> to vector<16x384xbf16>
    %c0_13 = arith.constant 0 : index
    %c0_14 = arith.constant 0 : index
    %12 = vector.load %arg2[%c0_13, %c0_14] : memref<384x128xbf16, #tpu.memory_space<vmem>>, vector<384x128xbf16>
    %cst_15 = arith.constant dense<0.000000e+00> : vector<16x128xf32>
    %13 = tpu.matmul %11, %12, %cst_15 {dimension_numbers = #tpu.dot_dimension_numbers<[1], [0], [0], [1], [0, 0, 1, 1], [], []>} : vector<16x384xbf16>, vector<384x128xbf16>, vector<16x128xf32> -> vector<16x128xf32>
    %14 = vector.extract_strided_slice %3 {offsets = [0, 0], sizes = [1, 128], strides = [1, 1]} : vector<4x128xf32> to vector<1x128xf32>
    %15 = vector.broadcast %14 : vector<1x128xf32> to vector<16x128xf32>
    %16 = arith.mulf %13, %15 : vector<16x128xf32>
    %17 = vector.extract_strided_slice %3 {offsets = [1, 0], sizes = [1, 128], strides = [1, 1]} : vector<4x128xf32> to vector<1x128xf32>
    %18 = vector.broadcast %17 : vector<1x128xf32> to vector<16x128xf32>
    %19 = arith.addf %16, %18 : vector<16x128xf32>
    %cst_16 = arith.constant 0.000000e+00 : f32
    %20 = vector.broadcast %cst_16 : f32 to vector<16x128xf32>
    %21 = arith.maximumf %19, %20 : vector<16x128xf32>
    %c1_17 = arith.constant 1 : index
    %c0_18 = arith.constant 0 : index
    %22 = vector.load %arg6[%c1_17, %c0_18] : memref<18x128xf32, #tpu.memory_space<vmem>>, vector<16x128xf32>
    tpu.vector_store %arg6[%c1_17, %c0_18], %21 {strides = array<i32>} : memref<18x128xf32, #tpu.memory_space<vmem>>, vector<16x128xf32>,
    %c0_19 = arith.constant 0 : index
    %c0_20 = arith.constant 0 : index
    %23 = vector.load %arg6[%c0_19, %c0_20] : memref<18x128xf32, #tpu.memory_space<vmem>>, vector<16x128xf32>
    %c1_21 = arith.constant 1 : index
    %c0_22 = arith.constant 0 : index
    %24 = vector.load %arg6[%c1_21, %c0_22] : memref<18x128xf32, #tpu.memory_space<vmem>>, vector<16x128xf32>
    %c2_23 = arith.constant 2 : index
    %c0_24 = arith.constant 0 : index
    %25 = vector.load %arg6[%c2_23, %c0_24] : memref<18x128xf32, #tpu.memory_space<vmem>>, vector<16x128xf32>
    %26 = tpu.concatenate %23, %24, %25 in 1 : vector<16x128xf32>, vector<16x128xf32>, vector<16x128xf32> -> vector<16x384xf32>
    %27 = arith.truncf %26 : vector<16x384xf32> to vector<16x384xbf16>
    %c0_25 = arith.constant 0 : index
    %c0_26 = arith.constant 0 : index
    %28 = vector.load %arg3[%c0_25, %c0_26] : memref<384x128xbf16, #tpu.memory_space<vmem>>, vector<384x128xbf16>
    %cst_27 = arith.constant dense<0.000000e+00> : vector<16x128xf32>
    %29 = tpu.matmul %27, %28, %cst_27 {dimension_numbers = #tpu.dot_dimension_numbers<[1], [0], [0], [1], [0, 0, 1, 1], [], []>} : vector<16x384xbf16>, vector<384x128xbf16>, vector<16x128xf32> -> vector<16x128xf32>
    %30 = vector.extract_strided_slice %3 {offsets = [2, 0], sizes = [1, 128], strides = [1, 1]} : vector<4x128xf32> to vector<1x128xf32>
    %31 = vector.broadcast %30 : vector<1x128xf32> to vector<16x128xf32>
    %32 = arith.mulf %29, %31 : vector<16x128xf32>
    %33 = vector.extract_strided_slice %3 {offsets = [3, 0], sizes = [1, 128], strides = [1, 1]} : vector<4x128xf32> to vector<1x128xf32>
    %34 = vector.broadcast %33 : vector<1x128xf32> to vector<16x128xf32>
    %35 = arith.addf %32, %34 : vector<16x128xf32>
    %36 = arith.addf %35, %5 : vector<16x128xf32>
    %cst_28 = arith.constant 0.000000e+00 : f32
    %37 = vector.broadcast %cst_28 : f32 to vector<16x128xf32>
    %38 = arith.maximumf %36, %37 : vector<16x128xf32>
    %c0_29 = arith.constant 0 : index
    %c0_30 = arith.constant 0 : index
    %c0_31 = arith.constant 0 : index
    %39 = vector.load %arg5[%c0_29, %c0_30, %c0_31] : memref<1x16x128xf32, #tpu.memory_space<vmem>>, vector<1x16x128xf32>
    %40 = vector.shape_cast %39 : vector<1x16x128xf32> to vector<16x128xf32>
    %41 = vector.shape_cast %38 : vector<16x128xf32> to vector<1x16x128xf32>
    tpu.vector_store %arg5[%c0_29, %c0_30, %c0_31], %41 {strides = array<i32>} : memref<1x16x128xf32, #tpu.memory_space<vmem>>, vector<1x16x128xf32>,
    return
  }
  func.func @transform_0(%arg0: i32) -> (i32, i32, i32) {
    %c0_i32 = arith.constant 0 : i32
    %c0_i32_0 = arith.constant 0 : i32
    %c0_i32_1 = arith.constant 0 : i32
    return %arg0, %c0_i32, %c0_i32_0 : i32, i32, i32
  }
  func.func @transform_1(%arg0: i32) -> (i32, i32) {
    %c0_i32 = arith.constant 0 : i32
    %c0_i32_0 = arith.constant 0 : i32
    %c0_i32_1 = arith.constant 0 : i32
    return %c0_i32, %c0_i32_0 : i32, i32
  }
  func.func @transform_2(%arg0: i32) -> (i32, i32) {
    %c0_i32 = arith.constant 0 : i32
    %c0_i32_0 = arith.constant 0 : i32
    %c0_i32_1 = arith.constant 0 : i32
    return %c0_i32, %c0_i32_0 : i32, i32
  }
  func.func @transform_3(%arg0: i32) -> (i32, i32) {
    %c0_i32 = arith.constant 0 : i32
    %c0_i32_0 = arith.constant 0 : i32
    %c0_i32_1 = arith.constant 0 : i32
    return %c0_i32, %c0_i32_0 : i32, i32
  }
  func.func @transform_4(%arg0: i32) -> (i32, i32, i32) {
    %c0_i32 = arith.constant 0 : i32
    %c0_i32_0 = arith.constant 0 : i32
    %c0_i32_1 = arith.constant 0 : i32
    return %arg0, %c0_i32, %c0_i32_0 : i32, i32, i32
  }
}

</mosaic_0001>

<llo_original>
// kernel: tile.23
$region0: #{tile.23}
  #allocation0 [shape = 's32[1]{0}', space=sflag, size = 0x4, scoped, tag = 'scoped memory for tile.23']
  %s0 = inlined_call_operand.vmem [shape: f32[8], index: 0, kind: input, shape index: {}]
  %s1 = inlined_call_operand.vmem [shape: f32[16,8], index: 1, kind: output, shape index: {}]
  // Predicated region
  $region2: #{tile.23} parent=0 // pred_check
    _
  $region3: #{tile.23} parent=0 // pred_check_branch
    %3 = sbr.rel (0) target = $region5
  $region4: #{tile.23} parent=0 // pred_region
    _
  $region5: #{tile.23} parent=0 // pred_fallthru
    _
  %v4 = vld [vmem:[%s0] ss:$0 sm:$0xff]
  %5 = vst [vmem:[%s1] sm:$0xff] %v4
  %s6 = scalar_lea.vmem %s1, 8
  %7 = vst [vmem:[%s6] sm:$0xff] %v4

// kernel: tile.36
$region0: #{tile.36}
  %s0 = inlined_call_operand.vmem [shape: f32[16,8], index: 0, kind: input, shape index: {}]
  %s1 = inlined_call_operand.vmem [shape: f32[1,128], index: 1, kind: output, shape index: {}]
  $region1: #{tile.36} parent=0
    #allocation0 [shape = 'u8[4096]{0}', space=vmem, size = 0x1000, scoped, tag = 'scoped mem for output reshape']
    %v2 = vld [vmem:[%s0] sm:$0x1]
    %vm3 = vcmask 64512
    %4 = vst.msk [vmem:[#allocation0] sm:$0x1] %vm3, %v2
    %s5 = scalar_lea.vmem %s0, 15
    %v6 = vld [vmem:[%s5] sm:$0x1]
    %7 = vrot.lane.b32.xlu0 %v6, 120
    %v8 = vpop.permute.xlu0 %7
    %vm9 = vcmask 1048512
    %10 = vst.msk [vmem:[#allocation0] sm:$0x1] %vm9, %v8
    %s11 = scalar_lea.vmem %s0, 14
    %v12 = vld [vmem:[%s11] sm:$0x1]
    %13 = vrot.lane.b32.xlu0 %v12, 112
    %v14 = vpop.permute.xlu0 %13
    %vm15 = vcmask 982912
    %16 = vst.msk [vmem:[#allocation0] sm:$0x1] %vm15, %v14
    %s17 = scalar_lea.vmem %s0, 13
    %v18 = vld [vmem:[%s17] sm:$0x1]
    %19 = vrot.lane.b32.xlu0 %v18, 104
    %v20 = vpop.permute.xlu0 %19
    %vm21 = vcmask 917312
    %22 = vst.msk [vmem:[#allocation0] sm:$0x1] %vm21, %v20
    %s23 = scalar_lea.vmem %s0, 12
    %v24 = vld [vmem:[%s23] sm:$0x1]
    %25 = vrot.lane.b32.xlu0 %v24, 96
    %v26 = vpop.permute.xlu0 %25
    %vm27 = vcmask 851712
    %28 = vst.msk [vmem:[#allocation0] sm:$0x1] %vm27, %v26
    %s29 = scalar_lea.vmem %s0, 11
    %v30 = vld [vmem:[%s29] sm:$0x1]
    %31 = vrot.lane.b32.xlu0 %v30, 88
    %v32 = vpop.permute.xlu0 %31
    %vm33 = vcmask 786112
    %34 = vst.msk [vmem:[#allocation0] sm:$0x1] %vm33, %v32
    %s35 = scalar_lea.vmem %s0, 10
    %v36 = vld [vmem:[%s35] sm:$0x1]
    %37 = vrot.lane.b32.xlu0 %v36, 80
    %v38 = vpop.permute.xlu0 %37
    %vm39 = vcmask 720512
    %40 = vst.msk [vmem:[#allocation0] sm:$0x1] %vm39, %v38
    %s41 = scalar_lea.vmem %s0, 9
    %v42 = vld [vmem:[%s41] sm:$0x1]
    %43 = vrot.lane.b32.xlu0 %v42, 72
    %v44 = vpop.permute.xlu0 %43
    %vm45 = vcmask 654912
    %46 = vst.msk [vmem:[#allocation0] sm:$0x1] %vm45, %v44
    %s47 = scalar_lea.vmem %s0, 8
    %v48 = vld [vmem:[%s47] sm:$0x1]
    %49 = vrot.lane.b32.xlu0 %v48, 64
    %v50 = vpop.permute.xlu0 %49
    %vm51 = vcmask 589312
    %52 = vst.msk [vmem:[#allocation0] sm:$0x1] %vm51, %v50
    %s53 = scalar_lea.vmem %s0, 7
    %v54 = vld [vmem:[%s53] sm:$0x1]
    %55 = vrot.lane.b32.xlu0 %v54, 56
    %v56 = vpop.permute.xlu0 %55
    %vm57 = vcmask 523712
    %58 = vst.msk [vmem:[#allocation0] sm:$0x1] %vm57, %v56
    %s59 = scalar_lea.vmem %s0, 6
    %v60 = vld [vmem:[%s59] sm:$0x1]
    %61 = vrot.lane.b32.xlu0 %v60, 48
    %v62 = vpop.permute.xlu0 %61
    %vm63 = vcmask 458112
    %64 = vst.msk [vmem:[#allocation0] sm:$0x1] %vm63, %v62
    %s65 = scalar_lea.vmem %s0, 5
    %v66 = vld [vmem:[%s65] sm:$0x1]
    %67 = vrot.lane.b32.xlu0 %v66, 40
    %v68 = vpop.permute.xlu0 %67
    %vm69 = vcmask 392512
    %70 = vst.msk [vmem:[#allocation0] sm:$0x1] %vm69, %v68
    %s71 = scalar_lea.vmem %s0, 4
    %v72 = vld [vmem:[%s71] sm:$0x1]
    %73 = vrot.lane.b32.xlu0 %v72, 32
    %v74 = vpop.permute.xlu0 %73
    %vm75 = vcmask 326912
    %76 = vst.msk [vmem:[#allocation0] sm:$0x1] %vm75, %v74
    %s77 = scalar_lea.vmem %s0, 3
    %v78 = vld [vmem:[%s77] sm:$0x1]
    %79 = vrot.lane.b32.xlu0 %v78, 24
    %v80 = vpop.permute.xlu0 %79
    %vm81 = vcmask 261312
    %82 = vst.msk [vmem:[#allocation0] sm:$0x1] %vm81, %v80
    %s83 = scalar_lea.vmem %s0, 2
    %v84 = vld [vmem:[%s83] sm:$0x1]
    %85 = vrot.lane.b32.xlu0 %v84, 16
    %v86 = vpop.permute.xlu0 %85
    %vm87 = vcmask 195712
    %88 = vst.msk [vmem:[#allocation0] sm:$0x1] %vm87, %v86
    %s89 = scalar_lea.vmem %s0, 1
    %v90 = vld [vmem:[%s89] sm:$0x1]
    %91 = vrot.lane.b32.xlu0 %v90, 8
    %v92 = vpop.permute.xlu0 %91
    %vm93 = vcmask 130112
    %94 = vst.msk [vmem:[#allocation0] sm:$0x1] %vm93, %v92
    %s96 = ssub.s32 2, 1
    %v97 = vld [vmem:[#allocation0] sm:%s96]
    %s99 = ssub.s32 2, 1
    %100 = vst [vmem:[%s1] sm:%s99] %v97

// kernel: basic_block_forward.1
$region0: #{basic_block_forward.1}
  #allocation0 [shape = 'u32[]', space=smem, size = 0x4, offset = 0x4, fixed_abs, tag = 'smem constant byte address 0x4 - core index']
  #allocation1 [shape = 'u32[72,128]{1,0:T(1,128)}', space=vmem, size = 0x9000, scoped, tag = 'internal scratch']
  #allocation2 [shape = 'f32[18,128]{1,0:T(8,128)}', space=vmem, size = 0x3000, scoped, tag = 'scratch operand']
  %s0 = inlined_call_operand.vmem [shape: f32[2,16,128], index: 0, kind: input, shape index: {}]
  %s1 = inlined_call_operand.vmem [shape: bf16[384,128], index: 1, kind: input, shape index: {}]
  %s2 = inlined_call_operand.vmem [shape: bf16[384,128], index: 2, kind: input, shape index: {}]
  %s3 = inlined_call_operand.vmem [shape: f32[4,128], index: 3, kind: input, shape index: {}]
  %s4 = inlined_call_operand.vmem [shape: f32[2,16,128], index: 4, kind: output, shape index: {}]
  %s5 = sld [smem:[#allocation0]]
  $region49: #{basic_block_forward.1} parent=0
    _
  %s7 = ssub.s32 1, %s5
  %s8 = scalar_select 0, %s7, %s5
  loop: start=0, step=1, limit=4
  $region2: #{basic_block_forward.1} parent=0 // loop_pre_header
    _
  $region3: #{basic_block_forward.1} parent=0 // loop_header
    %s10 = sphi 0, %s14
    %p11 = scmp.ge.s32.totalorder %s10, 4
    %s20 = sphi 0, %s22
    %s23 = sphi 0, %s20
    %s24 = sphi 0, %s23
    %s40 = sphi 0, %s24
    %s44 = sphi 0, %s44
    %s46 = sphi 0, %s44
    %s47 = sphi 0, %s46
    %s61 = sphi 0, %s47
    %s65 = sphi 0, %s65
    %s67 = sphi 0, %s65
    %s68 = sphi 0, %s67
    %s82 = sphi 0, %s68
    %s86 = sphi 0, %s86
    %s88 = sphi 0, %s86
    %s89 = sphi 0, %s88
    %s103 = sphi 0, %s89
    %s109 = sphi 0, %s111
    %s112 = sphi 0, %s109
    %s113 = sphi 0, %s112
    %s129 = sphi 0, %s113
  $region4: #{basic_block_forward.1} parent=0 // loop_header_branch
    %13 = sbr.rel (%p11) target = $region8
  $region5: #{basic_block_forward.1} parent=0 // loop_body
    %s15 = ssub.s32 %s10, 1
    %s16 = ssub.s32 %s10, 2
    %s17 = sadd.s32 %s10, 1
    %s18 = ssub.s32 %s10, %s17
    %p19 = scmp.eq.s32.totalorder %s18, 0
    %s21 = sadd.s32 %s20, 1
    %s22 = scalar_select %p19, %s20, %s21
    %p25 = pneg %p19
    %p26 = scmp.eq.s32.totalorder %s10, 1
    %p27 = por %p25, %p26
    %p28 = scmp.ne.s32.totalorder %s20, %s23
    %p29 = scmp.eq.s32.totalorder %s10, 0
    %p30 = por %p28, %p29
    %p31 = scmp.ne.s32.totalorder %s20, %s23
    %p32 = scmp.eq.s32.totalorder %s15, 1
    %p33 = por %p31, %p32
    %p34 = scmp.ne.s32.totalorder %s23, %s24
    %p35 = scmp.eq.s32.totalorder %s15, 0
    %p36 = por %p34, %p35
    %p37 = scmp.ne.s32.totalorder %s23, %s24
    %p38 = scmp.eq.s32.totalorder %s16, 1
    %p39 = por %p37, %p38
    %p41 = scmp.ne.s32.totalorder %s24, %s40
    %p42 = scmp.eq.s32.totalorder %s16, 0
    %p43 = por %p41, %p42
    %s45 = sadd.s32 %s44, 1
    %p48 = scmp.eq.s32.totalorder %s10, 1
    %p49 = scmp.ne.s32.totalorder %s44, %s46
    %p50 = scmp.eq.s32.totalorder %s10, 0
    %p51 = por %p49, %p50
    %p52 = scmp.ne.s32.totalorder %s44, %s46
    %p53 = scmp.eq.s32.totalorder %s15, 1
    %p54 = por %p52, %p53
    %p55 = scmp.ne.s32.totalorder %s46, %s47
    %p56 = scmp.eq.s32.totalorder %s15, 0
    %p57 = por %p55, %p56
    %p58 = scmp.ne.s32.totalorder %s46, %s47
    %p59 = scmp.eq.s32.totalorder %s16, 1
    %p60 = por %p58, %p59
    %p62 = scmp.ne.s32.totalorder %s47, %s61
    %p63 = scmp.eq.s32.totalorder %s16, 0
    %p64 = por %p62, %p63
    %s66 = sadd.s32 %s65, 1
    %p69 = scmp.eq.s32.totalorder %s10, 1
    %p70 = scmp.ne.s32.totalorder %s65, %s67
    %p71 = scmp.eq.s32.totalorder %s10, 0
    %p72 = por %p70, %p71
    %p73 = scmp.ne.s32.totalorder %s65, %s67
    %p74 = scmp.eq.s32.totalorder %s15, 1
    %p75 = por %p73, %p74
    %p76 = scmp.ne.s32.totalorder %s67, %s68
    %p77 = scmp.eq.s32.totalorder %s15, 0
    %p78 = por %p76, %p77
    %p79 = scmp.ne.s32.totalorder %s67, %s68
    %p80 = scmp.eq.s32.totalorder %s16, 1
    %p81 = por %p79, %p80
    %p83 = scmp.ne.s32.totalorder %s68, %s82
    %p84 = scmp.eq.s32.totalorder %s16, 0
    %p85 = por %p83, %p84
    %s87 = sadd.s32 %s86, 1
    %p90 = scmp.eq.s32.totalorder %s10, 1
    %p91 = scmp.ne.s32.totalorder %s86, %s88
    %p92 = scmp.eq.s32.totalorder %s10, 0
    %p93 = por %p91, %p92
    %p94 = scmp.ne.s32.totalorder %s86, %s88
    %p95 = scmp.eq.s32.totalorder %s15, 1
    %p96 = por %p94, %p95
    %p97 = scmp.ne.s32.totalorder %s88, %s89
    %p98 = scmp.eq.s32.totalorder %s15, 0
    %p99 = por %p97, %p98
    %p100 = scmp.ne.s32.totalorder %s88, %s89
    %p101 = scmp.eq.s32.totalorder %s16, 1
    %p102 = por %p100, %p101
    %p104 = scmp.ne.s32.totalorder %s89, %s103
    %p105 = scmp.eq.s32.totalorder %s16, 0
    %p106 = por %p104, %p105
    %s107 = ssub.s32 %s10, %s17
    %p108 = scmp.eq.s32.totalorder %s107, 0
    %s110 = sadd.s32 %s109, 1
    %s111 = scalar_select %p108, %s109, %s110
    %p114 = pneg %p108
    %p115 = scmp.eq.s32.totalorder %s10, 1
    %p116 = por %p114, %p115
    %p117 = scmp.ne.s32.totalorder %s109, %s112
    %p118 = scmp.eq.s32.totalorder %s10, 0
    %p119 = por %p117, %p118
    %p120 = scmp.ne.s32.totalorder %s109, %s112
    %p121 = scmp.eq.s32.totalorder %s15, 1
    %p122 = por %p120, %p121
    %p123 = scmp.ne.s32.totalorder %s112, %s113
    %p124 = scmp.eq.s32.totalorder %s15, 0
    %p125 = por %p123, %p124
    %p126 = scmp.ne.s32.totalorder %s112, %s113
    %p127 = scmp.eq.s32.totalorder %s16, 1
    %p128 = por %p126, %p127
    %p130 = scmp.ne.s32.totalorder %s113, %s129
    %p131 = scmp.eq.s32.totalorder %s16, 0
    %p132 = por %p130, %p131
    %p133 = scmp.le.s32.totalorder 1, %s10
    %p134 = scmp.lt.s32.totalorder %s10, 3
    %p135 = pnand %p133, %p134
    %p136 = pneg %p135
    // Predicated region
    $region9: #{basic_block_forward.1} parent=5 // pred_check
      _
    $region10: #{basic_block_forward.1} parent=5 // pred_check_branch
      %138 = sbr.rel (%p135) target = $region12
    $region11: #{basic_block_forward.1} parent=5 // pred_region
      %s139 = ssub.s32 %s10, 1
      // Predicated region
      $region13: #{basic_block_forward.1} parent=11 // pred_check
        %p140 = pneg %p57
      $region14: #{basic_block_forward.1} parent=11 // pred_check_branch
        %142 = sbr.rel (%p140) target = $region16
      $region15: #{basic_block_forward.1} parent=11 // pred_region
        _
      $region16: #{basic_block_forward.1} parent=11 // pred_fallthru
        _
      // Predicated region
      $region17: #{basic_block_forward.1} parent=11 // pred_check
        %p143 = pneg %p78
      $region18: #{basic_block_forward.1} parent=11 // pred_check_branch
        %145 = sbr.rel (%p143) target = $region20
      $region19: #{basic_block_forward.1} parent=11 // pred_region
        _
      $region20: #{basic_block_forward.1} parent=11 // pred_fallthru
        _
      // Predicated region
      $region21: #{basic_block_forward.1} parent=11 // pred_check
        %p146 = pneg %p99
      $region22: #{basic_block_forward.1} parent=11 // pred_check_branch
        %148 = sbr.rel (%p146) target = $region24
      $region23: #{basic_block_forward.1} parent=11 // pred_region
        _
      $region24: #{basic_block_forward.1} parent=11 // pred_fallthru
        _
    $region12: #{basic_block_forward.1} parent=5 // pred_fallthru
      _
    %p149 = scmp.lt.s32.totalorder %s10, 2
    // Predicated region
    $region25: #{basic_block_forward.1} parent=5 // pred_check
      %p150 = pneg %p149
    $region26: #{basic_block_forward.1} parent=5 // pred_check_branch
      %152 = sbr.rel (%p150) target = $region28
    $region27: #{basic_block_forward.1} parent=5 // pred_region
      // Predicated region
      $region29: #{basic_block_forward.1} parent=27 // pred_check
        %p153 = pneg %p30
      $region30: #{basic_block_forward.1} parent=27 // pred_check_branch
        %155 = sbr.rel (%p153) target = $region32
      $region31: #{basic_block_forward.1} parent=27 // pred_region
        %p156 = scmp.lt.s32.totalorder %s10, 1
        %s157 = scalar_select %p156, %s10, 1
        %s158 = smul.addr %s157, 2
        %s159 = smul.addr %s158, 8
        %s160 = scalar_lea.vmem %s0, %s159
      $region32: #{basic_block_forward.1} parent=27 // pred_fallthru
        _
    $region28: #{basic_block_forward.1} parent=5 // pred_fallthru
      _
    %p161 = scmp.le.s32.totalorder 1, %s10
    %p162 = scmp.lt.s32.totalorder %s10, 3
    %p163 = pnand %p161, %p162
    %p164 = pneg %p163
    // Predicated region
    $region33: #{basic_block_forward.1} parent=5 // pred_check
      _
    $region34: #{basic_block_forward.1} parent=5 // pred_check_branch
      %166 = sbr.rel (%p163) target = $region36
    $region35: #{basic_block_forward.1} parent=5 // pred_region
      %s167 = ssub.s32 %s10, 1
      %p168 = scmp.lt.s32.totalorder %s15, 1
      %s169 = scalar_select %p168, %s15, 1
      %s170 = smul.addr %s169, 2
      %s171 = smul.addr %s170, 8
      %s172 = scalar_lea.vmem %s0, %s171
      %p173 = pneg %p36
      %p174 = pneg %p33
      %p175 = pneg %p57
      %p176 = pneg %p54
      %p177 = pneg %p78
      %p178 = pneg %p75
      %p179 = pneg %p99
      %p180 = pneg %p96
      %p181 = pneg %p125
      %p182 = pneg %p122
      %p183 = scmp.lt.s32.totalorder %s15, 1
      %s184 = scalar_select %p183, %s15, 1
      %s185 = smul.addr %s184, 2
      %s186 = smul.addr %s185, 8
      %s187 = scalar_lea.vmem %s4, %s186
      %p188 = scmp.lt.s32.totalorder %s15, 1
      %s189 = scalar_select %p188, %s15, 1
      %s190 = smul.addr %s189, 2
      %s191 = smul.addr %s190, 8
      %s192 = scalar_lea.vmem %s0, %s191
      %p193 = scmp.lt.s32.totalorder %s15, 1
      %s194 = scalar_select %p193, %s15, 1
      %s195 = smul.addr %s194, 2
      %s196 = smul.addr %s195, 8
      %s197 = scalar_lea.vmem %s4, %s196
      %198 = vst [vmem:[#allocation2] sm:$0x1] 0.0
      %199 = vst [vmem:[#allocation2 + $0x11] sm:$0x1] 0.0
      %v200 = vld [vmem:[%s3] sm:$0xf]
      %v201 = vld [vmem:[%s192] sm:$0xff]
      %v202 = vld [vmem:[%s192 + $0x8] sm:$0xff]
      %203 = vst [vmem:[#allocation2 + $0x1] sm:$0xff] %v201
      %204 = vst [vmem:[#allocation2 + $0x9] sm:$0xff] %v202
      %v205 = vld [vmem:[#allocation2] sm:$0xff]
      %v206 = vld [vmem:[#allocation2 + $0x8] sm:$0xff]
      %v207 = vld [vmem:[#allocation2 + $0x1] sm:$0xff]
      %v208 = vld [vmem:[#allocation2 + $0x9] sm:$0xff]
      %v209 = vld [vmem:[#allocation2 + $0x2] sm:$0xff]
      %v210 = vld [vmem:[#allocation2 + $0xa] sm:$0xff]
      %v211 = vpack.c.bf16 %v206, %v205
      %v212 = vpack.c.bf16 %v208, %v207
      %v213 = vpack.c.bf16 %v210, %v209
      %v214 = vld [vmem:[%s1] sm:$0xf]
      %v215 = vld [vmem:[%s1 + $0x4] sm:$0xf]
      %v216 = vld [vmem:[%s1 + $0x8] sm:$0xf]
      %v217 = vld [vmem:[%s1 + $0xc] sm:$0xf]
      %v218 = vld [vmem:[%s1 + $0x10] sm:$0xf]
      %v219 = vld [vmem:[%s1 + $0x14] sm:$0xf]
      %v220 = vld [vmem:[%s1 + $0x18] sm:$0xf]
      %v221 = vld [vmem:[%s1 + $0x1c] sm:$0xf]
      %v222 = vld [vmem:[%s1 + $0x20] sm:$0xf]
      %v223 = vld [vmem:[%s1 + $0x24] sm:$0xf]
      %v224 = vld [vmem:[%s1 + $0x28] sm:$0xf]
      %v225 = vld [vmem:[%s1 + $0x2c] sm:$0xf]
      %v226 = vld [vmem:[%s1 + $0x30] sm:$0xf]
      %v227 = vld [vmem:[%s1 + $0x34] sm:$0xf]
      %v228 = vld [vmem:[%s1 + $0x38] sm:$0xf]
      %v229 = vld [vmem:[%s1 + $0x3c] sm:$0xf]
      %v230 = vld [vmem:[%s1 + $0x40] sm:$0xf]
      %v231 = vld [vmem:[%s1 + $0x44] sm:$0xf]
      %v232 = vld [vmem:[%s1 + $0x48] sm:$0xf]
      %v233 = vld [vmem:[%s1 + $0x4c] sm:$0xf]
      %v234 = vld [vmem:[%s1 + $0x50] sm:$0xf]
      %v235 = vld [vmem:[%s1 + $0x54] sm:$0xf]
      %v236 = vld [vmem:[%s1 + $0x58] sm:$0xf]
      %v237 = vld [vmem:[%s1 + $0x5c] sm:$0xf]
      %v238 = vld [vmem:[%s1 + $0x60] sm:$0xf]
      %v239 = vld [vmem:[%s1 + $0x64] sm:$0xf]
      %v240 = vld [vmem:[%s1 + $0x68] sm:$0xf]
      %v241 = vld [vmem:[%s1 + $0x6c] sm:$0xf]
      %v242 = vld [vmem:[%s1 + $0x70] sm:$0xf]
      %v243 = vld [vmem:[%s1 + $0x74] sm:$0xf]
      %v244 = vld [vmem:[%s1 + $0x78] sm:$0xf]
      %v245 = vld [vmem:[%s1 + $0x7c] sm:$0xf]
      %v246 = vld [vmem:[%s1 + $0x80] sm:$0xf]
      %v247 = vld [vmem:[%s1 + $0x84] sm:$0xf]
      %v248 = vld [vmem:[%s1 + $0x88] sm:$0xf]
      %v249 = vld [vmem:[%s1 + $0x8c] sm:$0xf]
      %v250 = vld [vmem:[%s1 + $0x90] sm:$0xf]
      %v251 = vld [vmem:[%s1 + $0x94] sm:$0xf]
      %v252 = vld [vmem:[%s1 + $0x98] sm:$0xf]
      %v253 = vld [vmem:[%s1 + $0x9c] sm:$0xf]
      %v254 = vld [vmem:[%s1 + $0xa0] sm:$0xf]
      %v255 = vld [vmem:[%s1 + $0xa4] sm:$0xf]
      %v256 = vld [vmem:[%s1 + $0xa8] sm:$0xf]
      %v257 = vld [vmem:[%s1 + $0xac] sm:$0xf]
      %v258 = vld [vmem:[%s1 + $0xb0] sm:$0xf]
      %v259 = vld [vmem:[%s1 + $0xb4] sm:$0xf]
      %v260 = vld [vmem:[%s1 + $0xb8] sm:$0xf]
      %v261 = vld [vmem:[%s1 + $0xbc] sm:$0xf]
      %v310 = vunpack.c.l.b16 %v214
      %v311 = vunpack.c.l.b16 %v215
      %v312 = vunpack.c.l.b16 %v216
      %v313 = vunpack.c.l.b16 %v217
      %v314 = vunpack.c.l.b16 %v218
      %v315 = vunpack.c.l.b16 %v219
      %v316 = vunpack.c.l.b16 %v220
      %v317 = vunpack.c.l.b16 %v221
      %v318 = vunpack.c.l.b16 %v222
      %v319 = vunpack.c.l.b16 %v223
      %v320 = vunpack.c.l.b16 %v224
      %v321 = vunpack.c.l.b16 %v225
      %v322 = vunpack.c.l.b16 %v226
      %v323 = vunpack.c.l.b16 %v227
      %v324 = vunpack.c.l.b16 %v228
      %v325 = vunpack.c.l.b16 %v229
      %v326 = vunpack.c.l.b16 %v230
      %v327 = vunpack.c.l.b16 %v231
      %v328 = vunpack.c.l.b16 %v232
      %v329 = vunpack.c.l.b16 %v233
      %v330 = vunpack.c.l.b16 %v234
      %v331 = vunpack.c.l.b16 %v235
      %v332 = vunpack.c.l.b16 %v236
      %v333 = vunpack.c.l.b16 %v237
      %v334 = vunpack.c.l.b16 %v238
      %v335 = vunpack.c.l.b16 %v239
      %v336 = vunpack.c.l.b16 %v240
      %v337 = vunpack.c.l.b16 %v241
      %v338 = vunpack.c.l.b16 %v242
      %v339 = vunpack.c.l.b16 %v243
      %v340 = vunpack.c.l.b16 %v244
      %v341 = vunpack.c.l.b16 %v245
      %v342 = vunpack.c.l.b16 %v246
      %v343 = vunpack.c.l.b16 %v247
      %v344 = vunpack.c.l.b16 %v248
      %v345 = vunpack.c.l.b16 %v249
      %v346 = vunpack.c.l.b16 %v250
      %v347 = vunpack.c.l.b16 %v251
      %v348 = vunpack.c.l.b16 %v252
      %v349 = vunpack.c.l.b16 %v253
      %v350 = vunpack.c.l.b16 %v254
      %v351 = vunpack.c.l.b16 %v255
      %v352 = vunpack.c.l.b16 %v256
      %v353 = vunpack.c.l.b16 %v257
      %v354 = vunpack.c.l.b16 %v258
      %v355 = vunpack.c.l.b16 %v259
      %v356 = vunpack.c.l.b16 %v260
      %v357 = vunpack.c.l.b16 %v261
      %v358 = vpack.c.b16 %v311, %v310
      %v359 = vpack.c.b16 %v313, %v312
      %v360 = vpack.c.b16 %v315, %v314
      %v361 = vpack.c.b16 %v317, %v316
      %v362 = vpack.c.b16 %v319, %v318
      %v363 = vpack.c.b16 %v321, %v320
      %v364 = vpack.c.b16 %v323, %v322
      %v365 = vpack.c.b16 %v325, %v324
      %v366 = vpack.c.b16 %v327, %v326
      %v367 = vpack.c.b16 %v329, %v328
      %v368 = vpack.c.b16 %v331, %v330
      %v369 = vpack.c.b16 %v333, %v332
      %v370 = vpack.c.b16 %v335, %v334
      %v371 = vpack.c.b16 %v337, %v336
      %v372 = vpack.c.b16 %v339, %v338
      %v373 = vpack.c.b16 %v341, %v340
      %v374 = vpack.c.b16 %v343, %v342
      %v375 = vpack.c.b16 %v345, %v344
      %v376 = vpack.c.b16 %v347, %v346
      %v377 = vpack.c.b16 %v349, %v348
      %v378 = vpack.c.b16 %v351, %v350
      %v379 = vpack.c.b16 %v353, %v352
      %v380 = vpack.c.b16 %v355, %v354
      %v381 = vpack.c.b16 %v357, %v356
      %406 = vmatpush.bf16.msra.mxu0 %v365
      %407 = vmatpush.bf16.msra.mxu0 %v364
      %408 = vmatpush.bf16.msra.mxu0 %v363
      %409 = vmatpush.bf16.msra.mxu0 %v362
      %410 = vmatpush.bf16.msra.mxu0 %v361
      %411 = vmatpush.bf16.msra.mxu0 %v360
      %412 = vmatpush.bf16.msra.mxu0 %v359
      %413 = vmatpush.bf16.msra.mxu0 %v358
      %414 = vmatmul.bf16.gmra.mxu0 %v211
      %v415 = vpop.f32.mrf.mxu0
      %v416 = vadd.f32 0.0, %v415
      %v417 = vpop.f32.mrf.mxu0
      %v418 = vadd.f32 0.0, %v417
      %419 = vdwg.mxu0
      %420 = vmatpush.bf16.msra.mxu0 %v373
      %421 = vmatpush.bf16.msra.mxu0 %v372
      %422 = vmatpush.bf16.msra.mxu0 %v371
      %423 = vmatpush.bf16.msra.mxu0 %v370
      %424 = vmatpush.bf16.msra.mxu0 %v369
      %425 = vmatpush.bf16.msra.mxu0 %v368
      %426 = vmatpush.bf16.msra.mxu0 %v367
      %427 = vmatpush.bf16.msra.mxu0 %v366
      %428 = vmatmul.bf16.gmra.mxu0 %v212
      %v429 = vpop.f32.mrf.mxu0
      %v430 = vadd.f32 %v416, %v429
      %v431 = vpop.f32.mrf.mxu0
      %v432 = vadd.f32 %v418, %v431
      %433 = vdwg.mxu0
      %434 = vmatpush.bf16.msra.mxu0 %v381
      %435 = vmatpush.bf16.msra.mxu0 %v380
      %436 = vmatpush.bf16.msra.mxu0 %v379
      %437 = vmatpush.bf16.msra.mxu0 %v378
      %438 = vmatpush.bf16.msra.mxu0 %v377
      %439 = vmatpush.bf16.msra.mxu0 %v376
      %440 = vmatpush.bf16.msra.mxu0 %v375
      %441 = vmatpush.bf16.msra.mxu0 %v374
      %442 = vmatmul.bf16.gmra.mxu0 %v213
      %v443 = vpop.f32.mrf.mxu0
      %v444 = vadd.f32 %v430, %v443
      %v445 = vpop.f32.mrf.mxu0
      %v446 = vadd.f32 %v432, %v445
      %447 = vdwg.mxu0
      %v448 = vperm.slane %v200, 0
      %v449 = vmul.f32 %v444, %v448
      %v450 = vmul.f32 %v446, %v448
      %v451 = vperm.slane %v200, 1
      %v452 = vadd.f32 %v449, %v451
      %v453 = vadd.f32 %v450, %v451
      %v454 = vmax.f32 %v452, 0.0
      %v455 = vmax.f32 %v453, 0.0
      %456 = vst [vmem:[#allocation2 + $0x1] sm:$0xff] %v454
      %457 = vst [vmem:[#allocation2 + $0x9] sm:$0xff] %v455
      %v458 = vld [vmem:[#allocation2] sm:$0xff]
      %v459 = vld [vmem:[#allocation2 + $0x8] sm:$0xff]
      %v460 = vld [vmem:[#allocation2 + $0x1] sm:$0xff]
      %v461 = vld [vmem:[#allocation2 + $0x9] sm:$0xff]
      %v462 = vld [vmem:[#allocation2 + $0x2] sm:$0xff]
      %v463 = vld [vmem:[#allocation2 + $0xa] sm:$0xff]
      %v464 = vpack.c.bf16 %v459, %v458
      %v465 = vpack.c.bf16 %v461, %v460
      %v466 = vpack.c.bf16 %v463, %v462
      %v467 = vld [vmem:[%s2] sm:$0xf]
      %v468 = vld [vmem:[%s2 + $0x4] sm:$0xf]
      %v469 = vld [vmem:[%s2 + $0x8] sm:$0xf]
      %v470 = vld [vmem:[%s2 + $0xc] sm:$0xf]
      %v471 = vld [vmem:[%s2 + $0x10] sm:$0xf]
      %v472 = vld [vmem:[%s2 + $0x14] sm:$0xf]
      %v473 = vld [vmem:[%s2 + $0x18] sm:$0xf]
      %v474 = vld [vmem:[%s2 + $0x1c] sm:$0xf]
      %v475 = vld [vmem:[%s2 + $0x20] sm:$0xf]
      %v476 = vld [vmem:[%s2 + $0x24] sm:$0xf]
      %v477 = vld [vmem:[%s2 + $0x28] sm:$0xf]
      %v478 = vld [vmem:[%s2 + $0x2c] sm:$0xf]
      %v479 = vld [vmem:[%s2 + $0x30] sm:$0xf]
      %v480 = vld [vmem:[%s2 + $0x34] sm:$0xf]
      %v481 = vld [vmem:[%s2 + $0x38] sm:$0xf]
      %v482 = vld [vmem:[%s2 + $0x3c] sm:$0xf]
      %v483 = vld [vmem:[%s2 + $0x40] sm:$0xf]
      %v484 = vld [vmem:[%s2 + $0x44] sm:$0xf]
      %v485 = vld [vmem:[%s2 + $0x48] sm:$0xf]
      %v486 = vld [vmem:[%s2 + $0x4c] sm:$0xf]
      %v487 = vld [vmem:[%s2 + $0x50] sm:$0xf]
      %v488 = vld [vmem:[%s2 + $0x54] sm:$0xf]
      %v489 = vld [vmem:[%s2 + $0x58] sm:$0xf]
      %v490 = vld [vmem:[%s2 + $0x5c] sm:$0xf]
      %v491 = vld [vmem:[%s2 + $0x60] sm:$0xf]
      %v492 = vld [vmem:[%s2 + $0x64] sm:$0xf]
      %v493 = vld [vmem:[%s2 + $0x68] sm:$0xf]
      %v494 = vld [vmem:[%s2 + $0x6c] sm:$0xf]
      %v495 = vld [vmem:[%s2 + $0x70] sm:$0xf]
      %v496 = vld [vmem:[%s2 + $0x74] sm:$0xf]
      %v497 = vld [vmem:[%s2 + $0x78] sm:$0xf]
      %v498 = vld [vmem:[%s2 + $0x7c] sm:$0xf]
      %v499 = vld [vmem:[%s2 + $0x80] sm:$0xf]
      %v500 = vld [vmem:[%s2 + $0x84] sm:$0xf]
      %v501 = vld [vmem:[%s2 + $0x88] sm:$0xf]
      %v502 = vld [vmem:[%s2 + $0x8c] sm:$0xf]
      %v503 = vld [vmem:[%s2 + $0x90] sm:$0xf]
      %v504 = vld [vmem:[%s2 + $0x94] sm:$0xf]
      %v505 = vld [vmem:[%s2 + $0x98] sm:$0xf]
      %v506 = vld [vmem:[%s2 + $0x9c] sm:$0xf]
      %v507 = vld [vmem:[%s2 + $0xa0] sm:$0xf]
      %v508 = vld [vmem:[%s2 + $0xa4] sm:$0xf]
      %v509 = vld [vmem:[%s2 + $0xa8] sm:$0xf]
      %v510 = vld [vmem:[%s2 + $0xac] sm:$0xf]
      %v511 = vld [vmem:[%s2 + $0xb0] sm:$0xf]
      %v512 = vld [vmem:[%s2 + $0xb4] sm:$0xf]
      %v513 = vld [vmem:[%s2 + $0xb8] sm:$0xf]
      %v514 = vld [vmem:[%s2 + $0xbc] sm:$0xf]
      %v563 = vunpack.c.l.b16 %v467
      %v564 = vunpack.c.l.b16 %v468
      %v565 = vunpack.c.l.b16 %v469
      %v566 = vunpack.c.l.b16 %v470
      %v567 = vunpack.c.l.b16 %v471
      %v568 = vunpack.c.l.b16 %v472
      %v569 = vunpack.c.l.b16 %v473
      %v570 = vunpack.c.l.b16 %v474
      %v571 = vunpack.c.l.b16 %v475
      %v572 = vunpack.c.l.b16 %v476
      %v573 = vunpack.c.l.b16 %v477
      %v574 = vunpack.c.l.b16 %v478
      %v575 = vunpack.c.l.b16 %v479
      %v576 = vunpack.c.l.b16 %v480
      %v577 = vunpack.c.l.b16 %v481
      %v578 = vunpack.c.l.b16 %v482
      %v579 = vunpack.c.l.b16 %v483
      %v580 = vunpack.c.l.b16 %v484
      %v581 = vunpack.c.l.b16 %v485
      %v582 = vunpack.c.l.b16 %v486
      %v583 = vunpack.c.l.b16 %v487
      %v584 = vunpack.c.l.b16 %v488
      %v585 = vunpack.c.l.b16 %v489
      %v586 = vunpack.c.l.b16 %v490
      %v587 = vunpack.c.l.b16 %v491
      %v588 = vunpack.c.l.b16 %v492
      %v589 = vunpack.c.l.b16 %v493
      %v590 = vunpack.c.l.b16 %v494
      %v591 = vunpack.c.l.b16 %v495
      %v592 = vunpack.c.l.b16 %v496
      %v593 = vunpack.c.l.b16 %v497
      %v594 = vunpack.c.l.b16 %v498
      %v595 = vunpack.c.l.b16 %v499
      %v596 = vunpack.c.l.b16 %v500
      %v597 = vunpack.c.l.b16 %v501
      %v598 = vunpack.c.l.b16 %v502
      %v599 = vunpack.c.l.b16 %v503
      %v600 = vunpack.c.l.b16 %v504
      %v601 = vunpack.c.l.b16 %v505
      %v602 = vunpack.c.l.b16 %v506
      %v603 = vunpack.c.l.b16 %v507
      %v604 = vunpack.c.l.b16 %v508
      %v605 = vunpack.c.l.b16 %v509
      %v606 = vunpack.c.l.b16 %v510
      %v607 = vunpack.c.l.b16 %v511
      %v608 = vunpack.c.l.b16 %v512
      %v609 = vunpack.c.l.b16 %v513
      %v610 = vunpack.c.l.b16 %v514
      %v611 = vpack.c.b16 %v564, %v563
      %v612 = vpack.c.b16 %v566, %v565
      %v613 = vpack.c.b16 %v568, %v567
      %v614 = vpack.c.b16 %v570, %v569
      %v615 = vpack.c.b16 %v572, %v571
      %v616 = vpack.c.b16 %v574, %v573
      %v617 = vpack.c.b16 %v576, %v575
      %v618 = vpack.c.b16 %v578, %v577
      %v619 = vpack.c.b16 %v580, %v579
      %v620 = vpack.c.b16 %v582, %v581
      %v621 = vpack.c.b16 %v584, %v583
      %v622 = vpack.c.b16 %v586, %v585
      %v623 = vpack.c.b16 %v588, %v587
      %v624 = vpack.c.b16 %v590, %v589
      %v625 = vpack.c.b16 %v592, %v591
      %v626 = vpack.c.b16 %v594, %v593
      %v627 = vpack.c.b16 %v596, %v595
      %v628 = vpack.c.b16 %v598, %v597
      %v629 = vpack.c.b16 %v600, %v599
      %v630 = vpack.c.b16 %v602, %v601
      %v631 = vpack.c.b16 %v604, %v603
      %v632 = vpack.c.b16 %v606, %v605
      %v633 = vpack.c.b16 %v608, %v607
      %v634 = vpack.c.b16 %v610, %v609
      %659 = vmatpush.bf16.msra.mxu0 %v618
      %660 = vmatpush.bf16.msra.mxu0 %v617
      %661 = vmatpush.bf16.msra.mxu0 %v616
      %662 = vmatpush.bf16.msra.mxu0 %v615
      %663 = vmatpush.bf16.msra.mxu0 %v614
      %664 = vmatpush.bf16.msra.mxu0 %v613
      %665 = vmatpush.bf16.msra.mxu0 %v612
      %666 = vmatpush.bf16.msra.mxu0 %v611
      %667 = vmatmul.bf16.gmra.mxu0 %v464
      %v668 = vpop.f32.mrf.mxu0
      %v669 = vadd.f32 0.0, %v668
      %v670 = vpop.f32.mrf.mxu0
      %v671 = vadd.f32 0.0, %v670
      %672 = vdwg.mxu0
      %673 = vmatpush.bf16.msra.mxu0 %v626
      %674 = vmatpush.bf16.msra.mxu0 %v625
      %675 = vmatpush.bf16.msra.mxu0 %v624
      %676 = vmatpush.bf16.msra.mxu0 %v623
      %677 = vmatpush.bf16.msra.mxu0 %v622
      %678 = vmatpush.bf16.msra.mxu0 %v621
      %679 = vmatpush.bf16.msra.mxu0 %v620
      %680 = vmatpush.bf16.msra.mxu0 %v619
      %681 = vmatmul.bf16.gmra.mxu0 %v465
      %v682 = vpop.f32.mrf.mxu0
      %v683 = vadd.f32 %v669, %v682
      %v684 = vpop.f32.mrf.mxu0
      %v685 = vadd.f32 %v671, %v684
      %686 = vdwg.mxu0
      %687 = vmatpush.bf16.msra.mxu0 %v634
      %688 = vmatpush.bf16.msra.mxu0 %v633
      %689 = vmatpush.bf16.msra.mxu0 %v632
      %690 = vmatpush.bf16.msra.mxu0 %v631
      %691 = vmatpush.bf16.msra.mxu0 %v630
      %692 = vmatpush.bf16.msra.mxu0 %v629
      %693 = vmatpush.bf16.msra.mxu0 %v628
      %694 = vmatpush.bf16.msra.mxu0 %v627
      %695 = vmatmul.bf16.gmra.mxu0 %v466
      %v696 = vpop.f32.mrf.mxu0
      %v697 = vadd.f32 %v683, %v696
      %v698 = vpop.f32.mrf.mxu0
      %v699 = vadd.f32 %v685, %v698
      %700 = vdwg.mxu0
      %v701 = vperm.slane %v200, 2
      %v702 = vmul.f32 %v697, %v701
      %v703 = vmul.f32 %v699, %v701
      %v704 = vperm.slane %v200, 3
      %v705 = vadd.f32 %v702, %v704
      %v706 = vadd.f32 %v703, %v704
      %v707 = vadd.f32 %v705, %v201
      %v708 = vadd.f32 %v706, %v202
      %v709 = vmax.f32 %v707, 0.0
      %v710 = vmax.f32 %v708, 0.0
      %711 = vst [vmem:[%s197] sm:$0xff] %v709
      %712 = vst [vmem:[%s197 + $0x8] sm:$0xff] %v710
      %p713 = scmp.lt.s32.totalorder %s15, 1
      %s714 = scalar_select %p713, %s15, 1
      %s715 = smul.addr %s714, 2
      %s716 = smul.addr %s715, 8
      %s717 = scalar_lea.vmem %s4, %s716
      // Predicated region
      $region37: #{basic_block_forward.1} parent=35 // pred_check
        %p718 = pneg %p122
      $region38: #{basic_block_forward.1} parent=35 // pred_check_branch
        %720 = sbr.rel (%p718) target = $region40
      $region39: #{basic_block_forward.1} parent=35 // pred_region
        _
      $region40: #{basic_block_forward.1} parent=35 // pred_fallthru
        _
    $region36: #{basic_block_forward.1} parent=5 // pred_fallthru
      _
    %p721 = scmp.le.s32.totalorder 2, %s10
    // Predicated region
    $region41: #{basic_block_forward.1} parent=5 // pred_check
      %p722 = pneg %p721
    $region42: #{basic_block_forward.1} parent=5 // pred_check_branch
      %724 = sbr.rel (%p722) target = $region44
    $region43: #{basic_block_forward.1} parent=5 // pred_region
      %s725 = ssub.s32 %s10, 2
      // Predicated region
      $region45: #{basic_block_forward.1} parent=43 // pred_check
        %p726 = pneg %p128
      $region46: #{basic_block_forward.1} parent=43 // pred_check_branch
        %728 = sbr.rel (%p726) target = $region48
      $region47: #{basic_block_forward.1} parent=43 // pred_region
        %p729 = scmp.lt.s32.totalorder %s16, 1
        %s730 = scalar_select %p729, %s16, 1
        %s731 = smul.addr %s730, 2
        %s732 = smul.addr %s731, 8
        %s733 = scalar_lea.vmem %s4, %s732
      $region48: #{basic_block_forward.1} parent=43 // pred_fallthru
        _
    $region44: #{basic_block_forward.1} parent=5 // pred_fallthru
      _
  $region6: #{basic_block_forward.1} parent=0 // loop_footer
    %s14 = sadd.s32 1, %s10
  $region7: #{basic_block_forward.1} parent=0 // loop_footer_branch
    %9 = sbr.rel target = $region3
  $region8: #{basic_block_forward.1} parent=0 // loop_exit
    _

</llo_original>
